<compile_context>
chip_gen: v5e
topology: v5e:2x2
jax: 0.10.0
libtpu: 0.0.40
codegen_flags: <defaults>
</compile_context>

<pallas_src>
import functools

import jax
import jax.numpy as jnp
from jax.experimental import pallas as pl
from jax.experimental.pallas import tpu as pltpu


def _policy_value_kernel(obs_ref, w1_ref, b1_ref, w2_ref, b2_ref, w3_ref, b3_ref,
                         out_ref):
    # Weights may be f32 or bf16; accumulate in f32 either way, keep elementwise
    # (bias-add, tanh) in f32.
    wdt = w1_ref.dtype
    x = obs_ref[...]

    # Fused layer 1: [TM, obs_dim] @ [obs_dim, 2H] -> [TM, 2H]
    h1 = jnp.tanh(
        jnp.dot(x.astype(wdt), w1_ref[...], preferred_element_type=jnp.float32)
        + b1_ref[...]
    )
    # Fused layer 2 (block-diagonal): [TM, 2H] @ [2H, 2H] -> [TM, 2H]
    h2 = jnp.tanh(
        jnp.dot(h1.astype(wdt), w2_ref[...], preferred_element_type=jnp.float32)
        + b2_ref[...]
    )
    # Fused heads (lane-dense padded): [TM, 2H] @ [2H, OUT_PAD] -> [TM, OUT_PAD]
    out_ref[...] = (
        jnp.dot(h2.astype(wdt), w3_ref[...], preferred_element_type=jnp.float32)
        + b3_ref[...]
    )


def policy_value_forward(obs, params, *, weights_dtype=jnp.float32, tm=128):
    """obs: [B, obs_dim] float32. params: dict of weights ([in,out]) / biases ([1,out]).

    Returns (logits [B, n_actions], value [B, 1]).
    """
    B, obs_dim = obs.shape
    H = params["w1p"].shape[1]
    n_actions = params["wa"].shape[1]
    head_dim = n_actions + 1                       # logits ++ value
    out_pad = ((head_dim + 127) // 128) * 128      # lane-dense output width
    f32 = jnp.float32

    # ---- build fused weights (exact zeros off-diagonal => branches stay independent) ----
    w1 = jnp.concatenate([params["w1p"], params["w1v"]], axis=1).astype(weights_dtype)
    b1 = jnp.concatenate([params["b1p"], params["b1v"]], axis=1).astype(f32)

    zhh = jnp.zeros((H, H), f32)
    w2 = jnp.block([[params["w2p"], zhh], [zhh, params["w2v"]]]).astype(weights_dtype)
    b2 = jnp.concatenate([params["b2p"], params["b2v"]], axis=1).astype(f32)

    w3 = jnp.zeros((2 * H, out_pad), f32)
    w3 = w3.at[:H, :n_actions].set(params["wa"])
    w3 = w3.at[H:, n_actions:head_dim].set(params["wv"])
    w3 = w3.astype(weights_dtype)
    b3 = jnp.zeros((1, out_pad), f32)
    b3 = b3.at[:, :n_actions].set(params["ba"])
    b3 = b3.at[:, n_actions:head_dim].set(params["bv"])

    # ---- batch grid ----
    tm = min(tm, B)
    grid = (pl.cdiv(B, tm),)

    batch_map = lambda i: (i, 0)
    weight_map = lambda i: (0, 0)   # weights resident in VMEM; no re-DMA across steps

    fused_params = (w1, b1, w2, b2, w3, b3)
    cost = pl.CostEstimate(
        flops=2 * B * (obs_dim * 2 * H + (2 * H) * (2 * H) + (2 * H) * out_pad),
        transcendentals=2 * B * 2 * H,  # two tanh layers of width 2H
        bytes_accessed=int(
            obs.size * obs.dtype.itemsize
            + sum(a.size * a.dtype.itemsize for a in fused_params)
            + B * out_pad * 4
        ),
    )

    out = pl.pallas_call(
        _policy_value_kernel,
        out_shape=jax.ShapeDtypeStruct((B, out_pad), jnp.float32),
        grid=grid,
        in_specs=[
            pl.BlockSpec((tm, obs_dim), batch_map),
            pl.BlockSpec((obs_dim, 2 * H), weight_map),
            pl.BlockSpec((1, 2 * H), weight_map),
            pl.BlockSpec((2 * H, 2 * H), weight_map),
            pl.BlockSpec((1, 2 * H), weight_map),
            pl.BlockSpec((2 * H, out_pad), weight_map),
            pl.BlockSpec((1, out_pad), weight_map),
        ],
        out_specs=pl.BlockSpec((tm, out_pad), batch_map),
        compiler_params=pltpu.CompilerParams(
            dimension_semantics=("parallel",),   # shards batch tiles across v7x's 2 TCs
        ),
        cost_estimate=cost,
    )(obs, w1, b1, w2, b2, w3, b3)

    # Split the fused, lane-dense output in the wrapper (free layout plumbing).
    logits = out[:, :n_actions]
    value = out[:, n_actions:head_dim]
    return logits, value


def init_params(key, obs_dim, hidden, n_actions):
    """Deterministic synthetic parameter init (shapes match SB3 ActorCriticPolicy)."""
    ks = jax.random.split(key, 12)

    def dense(k, fan_in, fan_out):
        scale = 1.0 / jnp.sqrt(jnp.float32(fan_in))
        return jax.random.uniform(
            k, (fan_in, fan_out), jnp.float32, minval=-scale, maxval=scale
        )

    return {
        # pi net: obs_dim -> hidden -> hidden
        "w1p": dense(ks[0], obs_dim, hidden), "b1p": jnp.zeros((1, hidden), jnp.float32),
        "w2p": dense(ks[1], hidden, hidden), "b2p": jnp.zeros((1, hidden), jnp.float32),
        # vf net: obs_dim -> hidden -> hidden
        "w1v": dense(ks[2], obs_dim, hidden), "b1v": jnp.zeros((1, hidden), jnp.float32),
        "w2v": dense(ks[3], hidden, hidden), "b2v": jnp.zeros((1, hidden), jnp.float32),
        # action_net: hidden -> n_actions (Categorical logits)
        "wa": dense(ks[4], hidden, n_actions), "ba": jnp.zeros((1, n_actions), jnp.float32),
        # value_net: hidden -> 1
        "wv": dense(ks[5], hidden, 1), "bv": jnp.zeros((1, 1), jnp.float32),
    }


def reference_forward(obs, p):
    """Pure-JAX reference of the same forward pass (for correctness check)."""
    h1p = jnp.tanh(obs @ p["w1p"] + p["b1p"])
    latent_pi = jnp.tanh(h1p @ p["w2p"] + p["b2p"])
    h1v = jnp.tanh(obs @ p["w1v"] + p["b1v"])
    latent_vf = jnp.tanh(h1v @ p["w2v"] + p["b2v"])
    logits = latent_pi @ p["wa"] + p["ba"]
    value = latent_vf @ p["wv"] + p["bv"]
    return logits, value


if __name__ == "__main__":
    B, OBS_DIM, HIDDEN, N_ACTIONS = 2, 32, 64, 8

    key = jax.random.PRNGKey(0)
    k_obs, k_params = jax.random.split(key)

    obs = jax.random.normal(k_obs, (B, OBS_DIM), jnp.float32)
    params = init_params(k_params, OBS_DIM, HIDDEN, N_ACTIONS)

    ref_logits, ref_value = reference_forward(obs, params)

    # f32 path (exact semantics of the original module).
    logits, value = jax.jit(policy_value_forward)(obs, params)
    logits, value = jax.block_until_ready((logits, value))
    assert logits.shape == (B, N_ACTIONS)
    assert value.shape == (B, 1)
    assert jnp.allclose(logits, ref_logits, atol=1e-4, rtol=1e-4)
    assert jnp.allclose(value, ref_value, atol=1e-4, rtol=1e-4)

    # bf16-weight MXU fast path (v6e/v7x); f32 accumulation, looser tolerance.
    fwd_bf16 = jax.jit(
        functools.partial(policy_value_forward, weights_dtype=jnp.bfloat16)
    )
    logits_bf16, value_bf16 = jax.block_until_ready(fwd_bf16(obs, params))
    assert jnp.allclose(logits_bf16, ref_logits, atol=5e-2, rtol=5e-2)
    assert jnp.allclose(value_bf16, ref_value, atol=5e-2, rtol=5e-2)

    print("KERNEL_OK")
</pallas_src>

<mosaic_0001>
module attributes {stable_mosaic.version = 11 : i64} {
  func.func @_policy_value_kernel(%arg0: i32, %arg1: memref<2x32xf32, #tpu.memory_space<vmem>>, %arg2: memref<32x128xf32, #tpu.memory_space<vmem>>, %arg3: memref<1x128xf32, #tpu.memory_space<vmem>>, %arg4: memref<128x128xf32, #tpu.memory_space<vmem>>, %arg5: memref<1x128xf32, #tpu.memory_space<vmem>>, %arg6: memref<128x128xf32, #tpu.memory_space<vmem>>, %arg7: memref<1x128xf32, #tpu.memory_space<vmem>>, %arg8: memref<2x128xf32, #tpu.memory_space<vmem>>) attributes {dimension_semantics = [#tpu.dimension_semantics<parallel>], iteration_bounds = array<i64: 1>, scalar_prefetch = 0 : i64, scratch_operands = 0 : i64, tpu.core_type = #tpu.core_type<tc>, window_params = [{transform_indices = @transform_0, window_bounds = array<i64: 2, 32>}, {pipeline_mode = #tpu.pipeline_mode<synchronous>, transform_indices = @transform_1, window_bounds = array<i64: 32, 128>}, {pipeline_mode = #tpu.pipeline_mode<synchronous>, transform_indices = @transform_2, window_bounds = array<i64: 1, 128>}, {pipeline_mode = #tpu.pipeline_mode<synchronous>, transform_indices = @transform_3, window_bounds = array<i64: 128, 128>}, {pipeline_mode = #tpu.pipeline_mode<synchronous>, transform_indices = @transform_4, window_bounds = array<i64: 1, 128>}, {pipeline_mode = #tpu.pipeline_mode<synchronous>, transform_indices = @transform_5, window_bounds = array<i64: 128, 128>}, {pipeline_mode = #tpu.pipeline_mode<synchronous>, transform_indices = @transform_6, window_bounds = array<i64: 1, 128>}, {transform_indices = @transform_7, window_bounds = array<i64: 2, 128>}]} {
    %c0 = arith.constant 0 : index
    %c0_0 = arith.constant 0 : index
    %0 = vector.load %arg1[%c0, %c0_0] : memref<2x32xf32, #tpu.memory_space<vmem>>, vector<2x32xf32>
    %c0_1 = arith.constant 0 : index
    %c0_2 = arith.constant 0 : index
    %1 = vector.load %arg2[%c0_1, %c0_2] : memref<32x128xf32, #tpu.memory_space<vmem>>, vector<32x128xf32>
    %cst = arith.constant dense<0.000000e+00> : vector<2x128xf32>
    %2 = tpu.matmul %0, %1, %cst {dimension_numbers = #tpu.dot_dimension_numbers<[1], [0], [0], [1], [0, 0, 1, 1], [], []>} : vector<2x32xf32>, vector<32x128xf32>, vector<2x128xf32> -> vector<2x128xf32>
    %c0_3 = arith.constant 0 : index
    %c0_4 = arith.constant 0 : index
    %3 = vector.load %arg3[%c0_3, %c0_4] : memref<1x128xf32, #tpu.memory_space<vmem>>, vector<1x128xf32>
    %4 = vector.broadcast %3 : vector<1x128xf32> to vector<2x128xf32>
    %5 = arith.addf %2, %4 : vector<2x128xf32>
    %6 = math.tanh %5 : vector<2x128xf32>
    %c0_5 = arith.constant 0 : index
    %c0_6 = arith.constant 0 : index
    %7 = vector.load %arg4[%c0_5, %c0_6] : memref<128x128xf32, #tpu.memory_space<vmem>>, vector<128x128xf32>
    %cst_7 = arith.constant dense<0.000000e+00> : vector<2x128xf32>
    %8 = tpu.matmul %6, %7, %cst_7 {dimension_numbers = #tpu.dot_dimension_numbers<[1], [0], [0], [1], [0, 0, 1, 1], [], []>} : vector<2x128xf32>, vector<128x128xf32>, vector<2x128xf32> -> vector<2x128xf32>
    %c0_8 = arith.constant 0 : index
    %c0_9 = arith.constant 0 : index
    %9 = vector.load %arg5[%c0_8, %c0_9] : memref<1x128xf32, #tpu.memory_space<vmem>>, vector<1x128xf32>
    %10 = vector.broadcast %9 : vector<1x128xf32> to vector<2x128xf32>
    %11 = arith.addf %8, %10 : vector<2x128xf32>
    %12 = math.tanh %11 : vector<2x128xf32>
    %c0_10 = arith.constant 0 : index
    %c0_11 = arith.constant 0 : index
    %13 = vector.load %arg6[%c0_10, %c0_11] : memref<128x128xf32, #tpu.memory_space<vmem>>, vector<128x128xf32>
    %cst_12 = arith.constant dense<0.000000e+00> : vector<2x128xf32>
    %14 = tpu.matmul %12, %13, %cst_12 {dimension_numbers = #tpu.dot_dimension_numbers<[1], [0], [0], [1], [0, 0, 1, 1], [], []>} : vector<2x128xf32>, vector<128x128xf32>, vector<2x128xf32> -> vector<2x128xf32>
    %c0_13 = arith.constant 0 : index
    %c0_14 = arith.constant 0 : index
    %15 = vector.load %arg7[%c0_13, %c0_14] : memref<1x128xf32, #tpu.memory_space<vmem>>, vector<1x128xf32>
    %16 = vector.broadcast %15 : vector<1x128xf32> to vector<2x128xf32>
    %17 = arith.addf %14, %16 : vector<2x128xf32>
    %c0_15 = arith.constant 0 : index
    %c0_16 = arith.constant 0 : index
    %18 = vector.load %arg8[%c0_15, %c0_16] : memref<2x128xf32, #tpu.memory_space<vmem>>, vector<2x128xf32>
    tpu.vector_store %arg8[%c0_15, %c0_16], %17 {strides = array<i32>} : memref<2x128xf32, #tpu.memory_space<vmem>>, vector<2x128xf32>,
    return
  }
  func.func @transform_0(%arg0: i32) -> (i32, i32) {
    %c0_i32 = arith.constant 0 : i32
    %c0_i32_0 = arith.constant 0 : i32
    return %arg0, %c0_i32 : i32, i32
  }
  func.func @transform_1(%arg0: i32) -> (i32, i32) {
    %c0_i32 = arith.constant 0 : i32
    %c0_i32_0 = arith.constant 0 : i32
    %c0_i32_1 = arith.constant 0 : i32
    return %c0_i32, %c0_i32_0 : i32, i32
  }
  func.func @transform_2(%arg0: i32) -> (i32, i32) {
    %c0_i32 = arith.constant 0 : i32
    %c0_i32_0 = arith.constant 0 : i32
    %c0_i32_1 = arith.constant 0 : i32
    return %c0_i32, %c0_i32_0 : i32, i32
  }
  func.func @transform_3(%arg0: i32) -> (i32, i32) {
    %c0_i32 = arith.constant 0 : i32
    %c0_i32_0 = arith.constant 0 : i32
    %c0_i32_1 = arith.constant 0 : i32
    return %c0_i32, %c0_i32_0 : i32, i32
  }
  func.func @transform_4(%arg0: i32) -> (i32, i32) {
    %c0_i32 = arith.constant 0 : i32
    %c0_i32_0 = arith.constant 0 : i32
    %c0_i32_1 = arith.constant 0 : i32
    return %c0_i32, %c0_i32_0 : i32, i32
  }
  func.func @transform_5(%arg0: i32) -> (i32, i32) {
    %c0_i32 = arith.constant 0 : i32
    %c0_i32_0 = arith.constant 0 : i32
    %c0_i32_1 = arith.constant 0 : i32
    return %c0_i32, %c0_i32_0 : i32, i32
  }
  func.func @transform_6(%arg0: i32) -> (i32, i32) {
    %c0_i32 = arith.constant 0 : i32
    %c0_i32_0 = arith.constant 0 : i32
    %c0_i32_1 = arith.constant 0 : i32
    return %c0_i32, %c0_i32_0 : i32, i32
  }
  func.func @transform_7(%arg0: i32) -> (i32, i32) {
    %c0_i32 = arith.constant 0 : i32
    %c0_i32_0 = arith.constant 0 : i32
    return %arg0, %c0_i32 : i32, i32
  }
}

</mosaic_0001>

<llo_original>
// kernel: policy_value_forward.1
$region0: #{policy_value_forward.1}
  #allocation0 [shape = 'u32[]', space=smem, size = 0x4, offset = 0x4, fixed_abs, tag = 'smem constant byte address 0x4 - core index']
  #allocation1 [shape = 'u32[72,128]{1,0:T(1,128)}', space=vmem, size = 0x9000, scoped, tag = 'internal scratch']
  %s0 = inlined_call_operand.vmem [shape: f32[2,32], index: 0, kind: input, shape index: {}]
  %s1 = inlined_call_operand.vmem [shape: f32[32,128], index: 1, kind: input, shape index: {}]
  %s2 = inlined_call_operand.vmem [shape: f32[1,128], index: 2, kind: input, shape index: {}]
  %s3 = inlined_call_operand.vmem [shape: f32[128,128], index: 3, kind: input, shape index: {}]
  %s4 = inlined_call_operand.vmem [shape: f32[1,128], index: 4, kind: input, shape index: {}]
  %s5 = inlined_call_operand.vmem [shape: f32[128,128], index: 5, kind: input, shape index: {}]
  %s6 = inlined_call_operand.vmem [shape: f32[1,128], index: 6, kind: input, shape index: {}]
  %s7 = inlined_call_operand.vmem [shape: f32[2,128], index: 7, kind: output, shape index: {}]
  %s8 = sld [smem:[#allocation0]]
  $region38: #{policy_value_forward.1} parent=0
    _
  %s10 = ssub.s32 1, %s8
  %s11 = scalar_select 0, %s10, %s8
  // Predicated region
  $region2: #{policy_value_forward.1} parent=0 // pred_check
    _
  $region3: #{policy_value_forward.1} parent=0 // pred_check_branch
    %13 = sbr.rel (0) target = $region5
  $region4: #{policy_value_forward.1} parent=0 // pred_region
    _
  $region5: #{policy_value_forward.1} parent=0 // pred_fallthru
    _
  // Predicated region
  $region6: #{policy_value_forward.1} parent=0 // pred_check
    _
  $region7: #{policy_value_forward.1} parent=0 // pred_check_branch
    %15 = sbr.rel (0) target = $region9
  $region8: #{policy_value_forward.1} parent=0 // pred_region
    _
  $region9: #{policy_value_forward.1} parent=0 // pred_fallthru
    _
  // Predicated region
  $region10: #{policy_value_forward.1} parent=0 // pred_check
    _
  $region11: #{policy_value_forward.1} parent=0 // pred_check_branch
    %17 = sbr.rel (0) target = $region13
  $region12: #{policy_value_forward.1} parent=0 // pred_region
    _
  $region13: #{policy_value_forward.1} parent=0 // pred_fallthru
    _
  // Predicated region
  $region14: #{policy_value_forward.1} parent=0 // pred_check
    _
  $region15: #{policy_value_forward.1} parent=0 // pred_check_branch
    %19 = sbr.rel (0) target = $region17
  $region16: #{policy_value_forward.1} parent=0 // pred_region
    _
  $region17: #{policy_value_forward.1} parent=0 // pred_fallthru
    _
  // Predicated region
  $region18: #{policy_value_forward.1} parent=0 // pred_check
    _
  $region19: #{policy_value_forward.1} parent=0 // pred_check_branch
    %21 = sbr.rel (0) target = $region21
  $region20: #{policy_value_forward.1} parent=0 // pred_region
    _
  $region21: #{policy_value_forward.1} parent=0 // pred_fallthru
    _
  // Predicated region
  $region22: #{policy_value_forward.1} parent=0 // pred_check
    _
  $region23: #{policy_value_forward.1} parent=0 // pred_check_branch
    %23 = sbr.rel (0) target = $region25
  $region24: #{policy_value_forward.1} parent=0 // pred_region
    _
  $region25: #{policy_value_forward.1} parent=0 // pred_fallthru
    _
  // Predicated region
  $region26: #{policy_value_forward.1} parent=0 // pred_check
    _
  $region27: #{policy_value_forward.1} parent=0 // pred_check_branch
    %25 = sbr.rel (0) target = $region29
  $region28: #{policy_value_forward.1} parent=0 // pred_region
    _
  $region29: #{policy_value_forward.1} parent=0 // pred_fallthru
    _
  %v26 = vld [vmem:[%s0] sm:$0x3]
  %v27 = vld [vmem:[%s1] sm:$0xff]
  %v28 = vld [vmem:[%s1 + $0x8] sm:$0xff]
  %v29 = vld [vmem:[%s1 + $0x10] sm:$0xff]
  %v30 = vld [vmem:[%s1 + $0x18] sm:$0xff]
  %v31 = vld [vmem:[%s2] sm:$0x1]
  %v33 = vperm.slane %v31, 0
  %vm35 = vcmask 261120
  %v37 = vsel %vm35, %v26, 0
  %39 = vmatpush.msra.mxu0 0.0
  %40 = vmatpush.msra.mxu0 0.0
  %41 = vmatpush.msra.mxu0 0.0
  %42 = vmatpush.msra.mxu0 0.0
  %43 = vmatpush.msra.mxu0 0.0
  %44 = vmatpush.msra.mxu0 0.0
  %45 = vmatpush.msra.mxu0 0.0
  %46 = vmatpush.msra.mxu0 0.0
  %47 = vmatpush.msra.mxu0 0.0
  %48 = vmatpush.msra.mxu0 0.0
  %49 = vmatpush.msra.mxu0 0.0
  %50 = vmatpush.msra.mxu0 0.0
  %51 = vmatpush.msra.mxu0 %v30
  %52 = vmatpush.msra.mxu0 %v29
  %53 = vmatpush.msra.mxu0 %v28
  %54 = vmatpush.msra.mxu0 %v27
  %55 = vmatmul.f32.gmra.mxu0 %v37
  %v56 = vpop.f32.mrf.mxu0
  %v57 = vadd.f32 %v33, %v56
  %58 = vdwg.mxu0
  %v59 = vtanh.pop %v57
  %v60 = vld [vmem:[%s3] sm:$0xff]
  %v61 = vld [vmem:[%s3 + $0x8] sm:$0xff]
  %v62 = vld [vmem:[%s3 + $0x10] sm:$0xff]
  %v63 = vld [vmem:[%s3 + $0x18] sm:$0xff]
  %v64 = vld [vmem:[%s3 + $0x20] sm:$0xff]
  %v65 = vld [vmem:[%s3 + $0x28] sm:$0xff]
  %v66 = vld [vmem:[%s3 + $0x30] sm:$0xff]
  %v67 = vld [vmem:[%s3 + $0x38] sm:$0xff]
  %v68 = vld [vmem:[%s3 + $0x40] sm:$0xff]
  %v69 = vld [vmem:[%s3 + $0x48] sm:$0xff]
  %v70 = vld [vmem:[%s3 + $0x50] sm:$0xff]
  %v71 = vld [vmem:[%s3 + $0x58] sm:$0xff]
  %v72 = vld [vmem:[%s3 + $0x60] sm:$0xff]
  %v73 = vld [vmem:[%s3 + $0x68] sm:$0xff]
  %v74 = vld [vmem:[%s3 + $0x70] sm:$0xff]
  %v75 = vld [vmem:[%s3 + $0x78] sm:$0xff]
  %v76 = vld [vmem:[%s4] sm:$0x1]
  %v78 = vperm.slane %v76, 0
  %80 = vmatpush.msra.mxu0 %v75
  %81 = vmatpush.msra.mxu0 %v74
  %82 = vmatpush.msra.mxu0 %v73
  %83 = vmatpush.msra.mxu0 %v72
  %84 = vmatpush.msra.mxu0 %v71
  %85 = vmatpush.msra.mxu0 %v70
  %86 = vmatpush.msra.mxu0 %v69
  %87 = vmatpush.msra.mxu0 %v68
  %88 = vmatpush.msra.mxu0 %v67
  %89 = vmatpush.msra.mxu0 %v66
  %90 = vmatpush.msra.mxu0 %v65
  %91 = vmatpush.msra.mxu0 %v64
  %92 = vmatpush.msra.mxu0 %v63
  %93 = vmatpush.msra.mxu0 %v62
  %94 = vmatpush.msra.mxu0 %v61
  %95 = vmatpush.msra.mxu0 %v60
  %96 = vmatmul.f32.gmra.mxu0 %v59
  %v97 = vpop.f32.mrf.mxu0
  %v98 = vadd.f32 %v78, %v97
  %99 = vdwg.mxu0
  %v100 = vtanh.pop %v98
  %v101 = vld [vmem:[%s5] sm:$0xff]
  %v102 = vld [vmem:[%s5 + $0x8] sm:$0xff]
  %v103 = vld [vmem:[%s5 + $0x10] sm:$0xff]
  %v104 = vld [vmem:[%s5 + $0x18] sm:$0xff]
  %v105 = vld [vmem:[%s5 + $0x20] sm:$0xff]
  %v106 = vld [vmem:[%s5 + $0x28] sm:$0xff]
  %v107 = vld [vmem:[%s5 + $0x30] sm:$0xff]
  %v108 = vld [vmem:[%s5 + $0x38] sm:$0xff]
  %v109 = vld [vmem:[%s5 + $0x40] sm:$0xff]
  %v110 = vld [vmem:[%s5 + $0x48] sm:$0xff]
  %v111 = vld [vmem:[%s5 + $0x50] sm:$0xff]
  %v112 = vld [vmem:[%s5 + $0x58] sm:$0xff]
  %v113 = vld [vmem:[%s5 + $0x60] sm:$0xff]
  %v114 = vld [vmem:[%s5 + $0x68] sm:$0xff]
  %v115 = vld [vmem:[%s5 + $0x70] sm:$0xff]
  %v116 = vld [vmem:[%s5 + $0x78] sm:$0xff]
  %v117 = vld [vmem:[%s6] sm:$0x1]
  %v119 = vperm.slane %v117, 0
  %121 = vmatpush.msra.mxu0 %v116
  %122 = vmatpush.msra.mxu0 %v115
  %123 = vmatpush.msra.mxu0 %v114
  %124 = vmatpush.msra.mxu0 %v113
  %125 = vmatpush.msra.mxu0 %v112
  %126 = vmatpush.msra.mxu0 %v111
  %127 = vmatpush.msra.mxu0 %v110
  %128 = vmatpush.msra.mxu0 %v109
  %129 = vmatpush.msra.mxu0 %v108
  %130 = vmatpush.msra.mxu0 %v107
  %131 = vmatpush.msra.mxu0 %v106
  %132 = vmatpush.msra.mxu0 %v105
  %133 = vmatpush.msra.mxu0 %v104
  %134 = vmatpush.msra.mxu0 %v103
  %135 = vmatpush.msra.mxu0 %v102
  %136 = vmatpush.msra.mxu0 %v101
  %137 = vmatmul.f32.gmra.mxu0 %v100
  %v138 = vpop.f32.mrf.mxu0
  %v139 = vadd.f32 %v119, %v138
  %140 = vdwg.mxu0
  %141 = vst [vmem:[%s7] sm:$0x3] %v139
  // Predicated region
  $region30: #{policy_value_forward.1} parent=0 // pred_check
    _
  $region31: #{policy_value_forward.1} parent=0 // pred_check_branch
    %143 = sbr.rel (0) target = $region33
  $region32: #{policy_value_forward.1} parent=0 // pred_region
    _
  $region33: #{policy_value_forward.1} parent=0 // pred_fallthru
    _
  // Predicated region
  $region34: #{policy_value_forward.1} parent=0 // pred_check
    _
  $region35: #{policy_value_forward.1} parent=0 // pred_check_branch
    %145 = sbr.rel (0) target = $region37
  $region36: #{policy_value_forward.1} parent=0 // pred_region
    _
  $region37: #{policy_value_forward.1} parent=0 // pred_fallthru
    _

</llo_original>
